<compile_context>
chip_gen: v7x
topology: tpu7x:2x2x1
jax: 0.10.0
libtpu: 0.0.40
codegen_flags: <defaults>
</compile_context>

<pallas_src>
import functools

import jax
import jax.numpy as jnp
from jax.experimental import pallas as pl
from jax.experimental.pallas import tpu as pltpu


def _round_up(a: int, m: int) -> int:
    return ((a + m - 1) // m) * m


def hiddennet_kernel(x_ref,
                     w1_ref, b1_ref,
                     w2_ref, b2_ref,
                     w3_ref, b3_ref,
                     w4_ref, b4_ref,
                     o_ref):
    # fc1 + relu  (bf16 operands, f32 accumulation / elementwise)
    h = jnp.dot(x_ref[...], w1_ref[...], preferred_element_type=jnp.float32)
    h = jnp.maximum(h + b1_ref[...], 0.0)
    # fc2 + relu
    h = jnp.dot(h.astype(jnp.bfloat16), w2_ref[...], preferred_element_type=jnp.float32)
    h = jnp.maximum(h + b2_ref[...], 0.0)
    # dropout (eval mode) -> identity
    # fc3 + relu
    h = jnp.dot(h.astype(jnp.bfloat16), w3_ref[...], preferred_element_type=jnp.float32)
    h = jnp.maximum(h + b3_ref[...], 0.0)
    # dropout (eval mode) -> identity
    # fc4 + relu (original PyTorch model applies ReLU before the sigmoid)
    h = jnp.dot(h.astype(jnp.bfloat16), w4_ref[...], preferred_element_type=jnp.float32)
    h = jnp.maximum(h + b4_ref[...], 0.0)
    # sigmoid
    o_ref[...] = jax.nn.sigmoid(h).astype(o_ref.dtype)


@functools.partial(jax.jit, static_argnames=("tile_b",))
def hiddennet_forward(x, params, tile_b=256):
    (w1, b1), (w2, b2), (w3, b3), (w4, b4) = params
    batch, z = x.shape
    h1 = w1.shape[1]          # 64
    h2 = w2.shape[1]          # 128
    h3 = w3.shape[1]          # 128
    out_dim = w4.shape[1]     # 3 * size * size (75 for size=5)

    # ---- lane padding: make the ragged contraction (z=100) and output (75) lane-dense ----
    z_pad = _round_up(z, 128)
    out_pad = _round_up(out_dim, 128)

    x_p = jnp.pad(x, ((0, 0), (0, z_pad - z))) if z_pad != z else x
    w1_p = jnp.pad(w1, ((0, z_pad - z), (0, 0))) if z_pad != z else w1
    w4_p = jnp.pad(w4, ((0, 0), (0, out_pad - out_dim))) if out_pad != out_dim else w4
    b4_p = jnp.pad(b4, ((0, 0), (0, out_pad - out_dim))) if out_pad != out_dim else b4

    # ---- batch tiling ----
    tb = min(tile_b, _round_up(batch, 8))      # small batches: single full-size step
    b_pad = _round_up(batch, tb)
    if b_pad != batch:
        x_p = jnp.pad(x_p, ((0, b_pad - batch), (0, 0)))
    grid = (pl.cdiv(b_pad, tb),)

    # ---- bf16 MXU operands; biases stay f32 for the f32 elementwise path ----
    x_c = x_p.astype(jnp.bfloat16)
    w1_c = w1_p.astype(jnp.bfloat16)
    w2_c = w2.astype(jnp.bfloat16)
    w3_c = w3.astype(jnp.bfloat16)
    w4_c = w4_p.astype(jnp.bfloat16)
    b1_c = b1.astype(jnp.float32)
    b2_c = b2.astype(jnp.float32)
    b3_c = b3.astype(jnp.float32)
    b4_c = b4_p.astype(jnp.float32)

    # Weights / biases: full-array blocks, constant index map -> VMEM-resident across steps.
    resident = lambda a: pl.BlockSpec(a.shape, lambda i: (0,) * a.ndim)

    flops = 2 * b_pad * (z_pad * h1 + h1 * h2 + h2 * h3 + h3 * out_pad)
    bytes_accessed = (
        x_c.size * 2
        + (w1_c.size + w2_c.size + w3_c.size + w4_c.size) * 2
        + (b1_c.size + b2_c.size + b3_c.size + b4_c.size) * 4
        + b_pad * out_pad * 4
    )

    out_padded = pl.pallas_call(
        hiddennet_kernel,
        out_shape=jax.ShapeDtypeStruct((b_pad, out_pad), jnp.float32),
        grid=grid,
        in_specs=[
            pl.BlockSpec((tb, z_pad), lambda i: (i, 0)),
            resident(w1_c), resident(b1_c),
            resident(w2_c), resident(b2_c),
            resident(w3_c), resident(b3_c),
            resident(w4_c), resident(b4_c),
        ],
        out_specs=pl.BlockSpec((tb, out_pad), lambda i: (i, 0)),
        compiler_params=pltpu.CompilerParams(
            dimension_semantics=("parallel",)),
        cost_estimate=pl.CostEstimate(
            flops=flops,
            transcendentals=b_pad * out_pad,
            bytes_accessed=bytes_accessed),
    )(x_c, w1_c, b1_c, w2_c, b2_c, w3_c, b3_c, w4_c, b4_c)

    # Slice off batch / lane padding.
    return out_padded[:batch, :out_dim]


def init_params(key, z=100, size=5):
    """Deterministic parameter init (PyTorch nn.Linear-style uniform bounds)."""
    dims = [(z, 64), (64, 128), (128, 128), (128, 3 * size * size)]
    params = []
    for (fan_in, fan_out) in dims:
        key, kw, kb = jax.random.split(key, 3)
        bound = 1.0 / jnp.sqrt(fan_in)
        w = jax.random.uniform(kw, (fan_in, fan_out), jnp.float32, -bound, bound)
        b = jax.random.uniform(kb, (1, fan_out), jnp.float32, -bound, bound)
        params.append((w, b))
    return params


def reference_forward(x, params):
    """Pure-JAX f32 reference mirroring the PyTorch forward (incl. final ReLU + sigmoid)."""
    h = x
    for (w, b) in params:
        h = jnp.maximum(h @ w + b, 0.0)
    return jax.nn.sigmoid(h)


if __name__ == "__main__":
    key = jax.random.PRNGKey(0)
    z, size, batch = 100, 5, 8

    kx, kp = jax.random.split(key)
    x = jax.random.normal(kx, (batch, z), jnp.float32)
    params = init_params(kp, z=z, size=size)

    out = hiddennet_forward(x, params)
    out = jax.block_until_ready(out)

    ref = reference_forward(x, params)
    assert out.shape == (batch, 3 * size * size)
    # bf16 MXU operands vs. pure f32 reference: allow ~1% absolute slack on [0.5, 1] outputs.
    assert jnp.allclose(out, ref, atol=2e-2, rtol=0.0), float(jnp.max(jnp.abs(out - ref)))

    print("KERNEL_OK")
</pallas_src>

<mosaic_0001>
module attributes {stable_mosaic.version = 11 : i64} {
  func.func @hiddennet_kernel(%arg0: i32, %arg1: memref<8x128xbf16, #tpu.memory_space<vmem>>, %arg2: memref<128x64xbf16, #tpu.memory_space<vmem>>, %arg3: memref<1x64xf32, #tpu.memory_space<vmem>>, %arg4: memref<64x128xbf16, #tpu.memory_space<vmem>>, %arg5: memref<1x128xf32, #tpu.memory_space<vmem>>, %arg6: memref<128x128xbf16, #tpu.memory_space<vmem>>, %arg7: memref<1x128xf32, #tpu.memory_space<vmem>>, %arg8: memref<128x128xbf16, #tpu.memory_space<vmem>>, %arg9: memref<1x128xf32, #tpu.memory_space<vmem>>, %arg10: memref<8x128xf32, #tpu.memory_space<vmem>>) attributes {dimension_semantics = [#tpu.dimension_semantics<parallel>], iteration_bounds = array<i64: 1>, scalar_prefetch = 0 : i64, scratch_operands = 0 : i64, tpu.core_type = #tpu.core_type<tc>, window_params = [{transform_indices = @transform_0, window_bounds = array<i64: 8, 128>}, {pipeline_mode = #tpu.pipeline_mode<synchronous>, transform_indices = @transform_1, window_bounds = array<i64: 128, 64>}, {pipeline_mode = #tpu.pipeline_mode<synchronous>, transform_indices = @transform_2, window_bounds = array<i64: 1, 64>}, {pipeline_mode = #tpu.pipeline_mode<synchronous>, transform_indices = @transform_3, window_bounds = array<i64: 64, 128>}, {pipeline_mode = #tpu.pipeline_mode<synchronous>, transform_indices = @transform_4, window_bounds = array<i64: 1, 128>}, {pipeline_mode = #tpu.pipeline_mode<synchronous>, transform_indices = @transform_5, window_bounds = array<i64: 128, 128>}, {pipeline_mode = #tpu.pipeline_mode<synchronous>, transform_indices = @transform_6, window_bounds = array<i64: 1, 128>}, {pipeline_mode = #tpu.pipeline_mode<synchronous>, transform_indices = @transform_7, window_bounds = array<i64: 128, 128>}, {pipeline_mode = #tpu.pipeline_mode<synchronous>, transform_indices = @transform_8, window_bounds = array<i64: 1, 128>}, {transform_indices = @transform_9, window_bounds = array<i64: 8, 128>}]} {
    %c0 = arith.constant 0 : index
    %c0_0 = arith.constant 0 : index
    %0 = vector.load %arg1[%c0, %c0_0] : memref<8x128xbf16, #tpu.memory_space<vmem>>, vector<8x128xbf16>
    %c0_1 = arith.constant 0 : index
    %c0_2 = arith.constant 0 : index
    %1 = vector.load %arg2[%c0_1, %c0_2] : memref<128x64xbf16, #tpu.memory_space<vmem>>, vector<128x64xbf16>
    %cst = arith.constant dense<0.000000e+00> : vector<8x64xf32>
    %2 = tpu.matmul %0, %1, %cst {dimension_numbers = #tpu.dot_dimension_numbers<[1], [0], [0], [1], [0, 0, 1, 1], [], []>} : vector<8x128xbf16>, vector<128x64xbf16>, vector<8x64xf32> -> vector<8x64xf32>
    %c0_3 = arith.constant 0 : index
    %c0_4 = arith.constant 0 : index
    %3 = vector.load %arg3[%c0_3, %c0_4] : memref<1x64xf32, #tpu.memory_space<vmem>>, vector<1x64xf32>
    %4 = vector.broadcast %3 : vector<1x64xf32> to vector<8x64xf32>
    %5 = arith.addf %2, %4 : vector<8x64xf32>
    %cst_5 = arith.constant 0.000000e+00 : f32
    %6 = vector.broadcast %cst_5 : f32 to vector<8x64xf32>
    %7 = arith.maximumf %5, %6 : vector<8x64xf32>
    %8 = arith.truncf %7 : vector<8x64xf32> to vector<8x64xbf16>
    %c0_6 = arith.constant 0 : index
    %c0_7 = arith.constant 0 : index
    %9 = vector.load %arg4[%c0_6, %c0_7] : memref<64x128xbf16, #tpu.memory_space<vmem>>, vector<64x128xbf16>
    %cst_8 = arith.constant dense<0.000000e+00> : vector<8x128xf32>
    %10 = tpu.matmul %8, %9, %cst_8 {dimension_numbers = #tpu.dot_dimension_numbers<[1], [0], [0], [1], [0, 0, 1, 1], [], []>} : vector<8x64xbf16>, vector<64x128xbf16>, vector<8x128xf32> -> vector<8x128xf32>
    %c0_9 = arith.constant 0 : index
    %c0_10 = arith.constant 0 : index
    %11 = vector.load %arg5[%c0_9, %c0_10] : memref<1x128xf32, #tpu.memory_space<vmem>>, vector<1x128xf32>
    %12 = vector.broadcast %11 : vector<1x128xf32> to vector<8x128xf32>
    %13 = arith.addf %10, %12 : vector<8x128xf32>
    %cst_11 = arith.constant 0.000000e+00 : f32
    %14 = vector.broadcast %cst_11 : f32 to vector<8x128xf32>
    %15 = arith.maximumf %13, %14 : vector<8x128xf32>
    %16 = arith.truncf %15 : vector<8x128xf32> to vector<8x128xbf16>
    %c0_12 = arith.constant 0 : index
    %c0_13 = arith.constant 0 : index
    %17 = vector.load %arg6[%c0_12, %c0_13] : memref<128x128xbf16, #tpu.memory_space<vmem>>, vector<128x128xbf16>
    %cst_14 = arith.constant dense<0.000000e+00> : vector<8x128xf32>
    %18 = tpu.matmul %16, %17, %cst_14 {dimension_numbers = #tpu.dot_dimension_numbers<[1], [0], [0], [1], [0, 0, 1, 1], [], []>} : vector<8x128xbf16>, vector<128x128xbf16>, vector<8x128xf32> -> vector<8x128xf32>
    %c0_15 = arith.constant 0 : index
    %c0_16 = arith.constant 0 : index
    %19 = vector.load %arg7[%c0_15, %c0_16] : memref<1x128xf32, #tpu.memory_space<vmem>>, vector<1x128xf32>
    %20 = vector.broadcast %19 : vector<1x128xf32> to vector<8x128xf32>
    %21 = arith.addf %18, %20 : vector<8x128xf32>
    %cst_17 = arith.constant 0.000000e+00 : f32
    %22 = vector.broadcast %cst_17 : f32 to vector<8x128xf32>
    %23 = arith.maximumf %21, %22 : vector<8x128xf32>
    %24 = arith.truncf %23 : vector<8x128xf32> to vector<8x128xbf16>
    %c0_18 = arith.constant 0 : index
    %c0_19 = arith.constant 0 : index
    %25 = vector.load %arg8[%c0_18, %c0_19] : memref<128x128xbf16, #tpu.memory_space<vmem>>, vector<128x128xbf16>
    %cst_20 = arith.constant dense<0.000000e+00> : vector<8x128xf32>
    %26 = tpu.matmul %24, %25, %cst_20 {dimension_numbers = #tpu.dot_dimension_numbers<[1], [0], [0], [1], [0, 0, 1, 1], [], []>} : vector<8x128xbf16>, vector<128x128xbf16>, vector<8x128xf32> -> vector<8x128xf32>
    %c0_21 = arith.constant 0 : index
    %c0_22 = arith.constant 0 : index
    %27 = vector.load %arg9[%c0_21, %c0_22] : memref<1x128xf32, #tpu.memory_space<vmem>>, vector<1x128xf32>
    %28 = vector.broadcast %27 : vector<1x128xf32> to vector<8x128xf32>
    %29 = arith.addf %26, %28 : vector<8x128xf32>
    %cst_23 = arith.constant 0.000000e+00 : f32
    %30 = vector.broadcast %cst_23 : f32 to vector<8x128xf32>
    %31 = arith.maximumf %29, %30 : vector<8x128xf32>
    %32 = arith.negf %31 : vector<8x128xf32>
    %33 = math.exp %32 : vector<8x128xf32>
    %cst_24 = arith.constant 1.000000e+00 : f32
    %34 = vector.broadcast %cst_24 : f32 to vector<8x128xf32>
    %35 = arith.addf %34, %33 : vector<8x128xf32>
    %36 = arith.divf %34, %35 : vector<8x128xf32>
    %c0_25 = arith.constant 0 : index
    %c0_26 = arith.constant 0 : index
    %37 = vector.load %arg10[%c0_25, %c0_26] : memref<8x128xf32, #tpu.memory_space<vmem>>, vector<8x128xf32>
    tpu.vector_store %arg10[%c0_25, %c0_26], %36 {strides = array<i32>} : memref<8x128xf32, #tpu.memory_space<vmem>>, vector<8x128xf32>,
    return
  }
  func.func @transform_0(%arg0: i32) -> (i32, i32) {
    %c0_i32 = arith.constant 0 : i32
    %c0_i32_0 = arith.constant 0 : i32
    return %arg0, %c0_i32 : i32, i32
  }
  func.func @transform_1(%arg0: i32) -> (i32, i32) {
    %c0_i32 = arith.constant 0 : i32
    %c0_i32_0 = arith.constant 0 : i32
    %c0_i32_1 = arith.constant 0 : i32
    return %c0_i32, %c0_i32_0 : i32, i32
  }
  func.func @transform_2(%arg0: i32) -> (i32, i32) {
    %c0_i32 = arith.constant 0 : i32
    %c0_i32_0 = arith.constant 0 : i32
    %c0_i32_1 = arith.constant 0 : i32
    return %c0_i32, %c0_i32_0 : i32, i32
  }
  func.func @transform_3(%arg0: i32) -> (i32, i32) {
    %c0_i32 = arith.constant 0 : i32
    %c0_i32_0 = arith.constant 0 : i32
    %c0_i32_1 = arith.constant 0 : i32
    return %c0_i32, %c0_i32_0 : i32, i32
  }
  func.func @transform_4(%arg0: i32) -> (i32, i32) {
    %c0_i32 = arith.constant 0 : i32
    %c0_i32_0 = arith.constant 0 : i32
    %c0_i32_1 = arith.constant 0 : i32
    return %c0_i32, %c0_i32_0 : i32, i32
  }
  func.func @transform_5(%arg0: i32) -> (i32, i32) {
    %c0_i32 = arith.constant 0 : i32
    %c0_i32_0 = arith.constant 0 : i32
    %c0_i32_1 = arith.constant 0 : i32
    return %c0_i32, %c0_i32_0 : i32, i32
  }
  func.func @transform_6(%arg0: i32) -> (i32, i32) {
    %c0_i32 = arith.constant 0 : i32
    %c0_i32_0 = arith.constant 0 : i32
    %c0_i32_1 = arith.constant 0 : i32
    return %c0_i32, %c0_i32_0 : i32, i32
  }
  func.func @transform_7(%arg0: i32) -> (i32, i32) {
    %c0_i32 = arith.constant 0 : i32
    %c0_i32_0 = arith.constant 0 : i32
    %c0_i32_1 = arith.constant 0 : i32
    return %c0_i32, %c0_i32_0 : i32, i32
  }
  func.func @transform_8(%arg0: i32) -> (i32, i32) {
    %c0_i32 = arith.constant 0 : i32
    %c0_i32_0 = arith.constant 0 : i32
    %c0_i32_1 = arith.constant 0 : i32
    return %c0_i32, %c0_i32_0 : i32, i32
  }
  func.func @transform_9(%arg0: i32) -> (i32, i32) {
    %c0_i32 = arith.constant 0 : i32
    %c0_i32_0 = arith.constant 0 : i32
    return %arg0, %c0_i32 : i32, i32
  }
}

</mosaic_0001>

<llo_original>
// kernel: hiddennet_forward.1
$region0: #{hiddennet_forward.1}
  #allocation0 [shape = 'u32[]', space=smem, size = 0x4, offset = 0x4, fixed_abs, tag = 'smem constant byte address 0x4 - core index']
  #allocation1 [shape = 'u32[144,128]{1,0:T(1,128)}', space=vmem, size = 0x12000, scoped, tag = 'internal scratch']
  %s0 = inlined_call_operand.vmem [shape: bf16[8,128], index: 0, kind: input, shape index: {}]
  %s1 = inlined_call_operand.vmem [shape: bf16[128,64], index: 1, kind: input, shape index: {}]
  %s2 = inlined_call_operand.vmem [shape: f32[1,64], index: 2, kind: input, shape index: {}]
  %s3 = inlined_call_operand.vmem [shape: bf16[64,128], index: 3, kind: input, shape index: {}]
  %s4 = inlined_call_operand.vmem [shape: f32[1,128], index: 4, kind: input, shape index: {}]
  %s5 = inlined_call_operand.vmem [shape: bf16[128,128], index: 5, kind: input, shape index: {}]
  %s6 = inlined_call_operand.vmem [shape: f32[1,128], index: 6, kind: input, shape index: {}]
  %s7 = inlined_call_operand.vmem [shape: bf16[128,128], index: 7, kind: input, shape index: {}]
  %s8 = inlined_call_operand.vmem [shape: f32[1,128], index: 8, kind: input, shape index: {}]
  %s9 = inlined_call_operand.hbm [shape: f32[8,128], index: 9, kind: output, shape index: {}]
  %s10 = sld [smem:[#allocation0]]
  $region46: #{hiddennet_forward.1} parent=0
    _
  %s12 = ssub.s32 1, %s10
  %s13 = scalar_select 0, %s12, %s10
  $region1: #{hiddennet_forward.1} parent=0
    #allocation2 [shape = 'u8[4096]{0}', space=vmem, size = 0x1000, scoped, tag = 'output window, operand 0, single buffered']
    #allocation3 [shape = 's32[1]{0}', space=sflag, size = 0x4, scoped, tag = 'scoped memory for hiddennet_forward.1']
    %14 = vsyncpa [#allocation3], 0
    // Predicated region
    $region2: #{hiddennet_forward.1} parent=1 // pred_check
      _
    $region3: #{hiddennet_forward.1} parent=1 // pred_check_branch
      %16 = sbr.rel (0) target = $region5
    $region4: #{hiddennet_forward.1} parent=1 // pred_region
      _
    $region5: #{hiddennet_forward.1} parent=1 // pred_fallthru
      _
    // Predicated region
    $region6: #{hiddennet_forward.1} parent=1 // pred_check
      _
    $region7: #{hiddennet_forward.1} parent=1 // pred_check_branch
      %18 = sbr.rel (0) target = $region9
    $region8: #{hiddennet_forward.1} parent=1 // pred_region
      _
    $region9: #{hiddennet_forward.1} parent=1 // pred_fallthru
      _
    // Predicated region
    $region10: #{hiddennet_forward.1} parent=1 // pred_check
      _
    $region11: #{hiddennet_forward.1} parent=1 // pred_check_branch
      %20 = sbr.rel (0) target = $region13
    $region12: #{hiddennet_forward.1} parent=1 // pred_region
      _
    $region13: #{hiddennet_forward.1} parent=1 // pred_fallthru
      _
    // Predicated region
    $region14: #{hiddennet_forward.1} parent=1 // pred_check
      _
    $region15: #{hiddennet_forward.1} parent=1 // pred_check_branch
      %22 = sbr.rel (0) target = $region17
    $region16: #{hiddennet_forward.1} parent=1 // pred_region
      _
    $region17: #{hiddennet_forward.1} parent=1 // pred_fallthru
      _
    // Predicated region
    $region18: #{hiddennet_forward.1} parent=1 // pred_check
      _
    $region19: #{hiddennet_forward.1} parent=1 // pred_check_branch
      %24 = sbr.rel (0) target = $region21
    $region20: #{hiddennet_forward.1} parent=1 // pred_region
      _
    $region21: #{hiddennet_forward.1} parent=1 // pred_fallthru
      _
    // Predicated region
    $region22: #{hiddennet_forward.1} parent=1 // pred_check
      _
    $region23: #{hiddennet_forward.1} parent=1 // pred_check_branch
      %26 = sbr.rel (0) target = $region25
    $region24: #{hiddennet_forward.1} parent=1 // pred_region
      _
    $region25: #{hiddennet_forward.1} parent=1 // pred_fallthru
      _
    // Predicated region
    $region26: #{hiddennet_forward.1} parent=1 // pred_check
      _
    $region27: #{hiddennet_forward.1} parent=1 // pred_check_branch
      %28 = sbr.rel (0) target = $region29
    $region28: #{hiddennet_forward.1} parent=1 // pred_region
      _
    $region29: #{hiddennet_forward.1} parent=1 // pred_fallthru
      _
    // Predicated region
    $region30: #{hiddennet_forward.1} parent=1 // pred_check
      _
    $region31: #{hiddennet_forward.1} parent=1 // pred_check_branch
      %30 = sbr.rel (0) target = $region33
    $region32: #{hiddennet_forward.1} parent=1 // pred_region
      _
    $region33: #{hiddennet_forward.1} parent=1 // pred_fallthru
      _
    // Predicated region
    $region34: #{hiddennet_forward.1} parent=1 // pred_check
      _
    $region35: #{hiddennet_forward.1} parent=1 // pred_check_branch
      %32 = sbr.rel (0) target = $region37
    $region36: #{hiddennet_forward.1} parent=1 // pred_region
      _
    $region37: #{hiddennet_forward.1} parent=1 // pred_fallthru
      _
    %v34 = vld [vmem:[%s0] sm:$0xf]
    %v35 = vld [vmem:[%s1] sm:$0xf]
    %v36 = vld [vmem:[%s1 + $0x4] sm:$0xf]
    %v37 = vld [vmem:[%s1 + $0x8] sm:$0xf]
    %v38 = vld [vmem:[%s1 + $0xc] sm:$0xf]
    %v39 = vld [vmem:[%s1 + $0x10] sm:$0xf]
    %v40 = vld [vmem:[%s1 + $0x14] sm:$0xf]
    %v41 = vld [vmem:[%s1 + $0x18] sm:$0xf]
    %v42 = vld [vmem:[%s1 + $0x1c] sm:$0xf]
    %v43 = vld [vmem:[%s1 + $0x20] sm:$0xf]
    %v44 = vld [vmem:[%s1 + $0x24] sm:$0xf]
    %v45 = vld [vmem:[%s1 + $0x28] sm:$0xf]
    %v46 = vld [vmem:[%s1 + $0x2c] sm:$0xf]
    %v47 = vld [vmem:[%s1 + $0x30] sm:$0xf]
    %v48 = vld [vmem:[%s1 + $0x34] sm:$0xf]
    %v49 = vld [vmem:[%s1 + $0x38] sm:$0xf]
    %v50 = vld [vmem:[%s1 + $0x3c] sm:$0xf]
    %v51 = vld [vmem:[%s2] sm:$0x1]
    %v53 = vlaneseq
    %v54 = vshrl.u32 %v53, 7
    %v55 = vsub.s32 0, %v54
    %v56 = vrot.slane %v51, %v55
    %v74 = vunpack.c.l.b16 %v35
    %v75 = vunpack.c.l.b16 %v36
    %v76 = vunpack.c.l.b16 %v37
    %v77 = vunpack.c.l.b16 %v38
    %v78 = vunpack.c.l.b16 %v39
    %v79 = vunpack.c.l.b16 %v40
    %v80 = vunpack.c.l.b16 %v41
    %v81 = vunpack.c.l.b16 %v42
    %v82 = vunpack.c.l.b16 %v43
    %v83 = vunpack.c.l.b16 %v44
    %v84 = vunpack.c.l.b16 %v45
    %v85 = vunpack.c.l.b16 %v46
    %v86 = vunpack.c.l.b16 %v47
    %v87 = vunpack.c.l.b16 %v48
    %v88 = vunpack.c.l.b16 %v49
    %v89 = vunpack.c.l.b16 %v50
    %v90 = vpack.c.b16 %v75, %v74
    %v91 = vpack.c.b16 %v77, %v76
    %v92 = vpack.c.b16 %v79, %v78
    %v93 = vpack.c.b16 %v81, %v80
    %v94 = vpack.c.b16 %v83, %v82
    %v95 = vpack.c.b16 %v85, %v84
    %v96 = vpack.c.b16 %v87, %v86
    %v97 = vpack.c.b16 %v89, %v88
    %106 = vmatprep.subr.bf16.mxu0 0
    %107 = vmatpush1.bf16.msra.mxu0 %v90
    %108 = vmatprep.subr.bf16.mxu0 0
    %109 = vmatpush1.bf16.msra.mxu0 %v91
    %110 = vmatprep.subr.bf16.mxu0 0
    %111 = vmatpush1.bf16.msra.mxu0 %v92
    %112 = vmatprep.subr.bf16.mxu0 0
    %113 = vmatpush1.bf16.msra.mxu0 %v93
    %114 = vmatprep.subr.bf16.mxu0 0
    %115 = vmatpush1.bf16.msra.mxu0 %v94
    %116 = vmatprep.subr.bf16.mxu0 0
    %117 = vmatpush1.bf16.msra.mxu0 %v95
    %118 = vmatprep.subr.bf16.mxu0 0
    %119 = vmatpush1.bf16.msra.mxu0 %v96
    %120 = vmatprep.subr.bf16.mxu0 0
    %121 = vmatpush1.bf16.msra.mxu0 %v97
    %122 = vmatprep.subr.bf16.mxu0 0
    %123 = vmatpush1.bf16.msra.mxu0 0
    %124 = vmatprep.subr.bf16.mxu0 0
    %125 = vmatpush1.bf16.msra.mxu0 0
    %126 = vmatprep.subr.bf16.mxu0 0
    %127 = vmatpush1.bf16.msra.mxu0 0
    %128 = vmatprep.subr.bf16.mxu0 0
    %129 = vmatpush1.bf16.msra.mxu0 0
    %130 = vmatprep.subr.bf16.mxu0 0
    %131 = vmatpush1.bf16.msra.mxu0 0
    %132 = vmatprep.subr.bf16.mxu0 0
    %133 = vmatpush1.bf16.msra.mxu0 0
    %134 = vmatprep.subr.bf16.mxu0 0
    %135 = vmatpush1.bf16.msra.mxu0 0
    %136 = vmatprep.subr.bf16.mxu0 0
    %137 = vmatpush1.bf16.msra.mxu0 0
    %138 = vmatprep.mubr.bf16.mxu0 0
    %139 = vmatmul.mubr.bf16.gmra.mrb[0].mxu0 %v34
    %v140 = vpop.f32.mrb[0].mxu0
    %v141 = vadd.f32 %v56, %v140
    %v142 = vpop.f32.mrb[0].mxu0
    %v143 = vpop.f32.mrb[0].mxu0
    %v144 = vpop.f32.mrb[0].mxu0
    %145 = vdwg.mxu0
    %v146 = vmax.f32 %v141, 0.0
    %v147 = vpack.c.bf16 %v146, %v146
    %v148 = vld [vmem:[%s3] sm:$0xf]
    %v149 = vld [vmem:[%s3 + $0x4] sm:$0xf]
    %v150 = vld [vmem:[%s3 + $0x8] sm:$0xf]
    %v151 = vld [vmem:[%s3 + $0xc] sm:$0xf]
    %v152 = vld [vmem:[%s3 + $0x10] sm:$0xf]
    %v153 = vld [vmem:[%s3 + $0x14] sm:$0xf]
    %v154 = vld [vmem:[%s3 + $0x18] sm:$0xf]
    %v155 = vld [vmem:[%s3 + $0x1c] sm:$0xf]
    %v156 = vld [vmem:[%s4] sm:$0x1]
    %v158 = vlaneseq
    %v159 = vshrl.u32 %v158, 7
    %v160 = vsub.s32 0, %v159
    %v161 = vrot.slane %v156, %v160
    %v171 = vunpack.c.l.b16 %v148
    %v172 = vunpack.c.l.b16 %v149
    %v173 = vunpack.c.l.b16 %v150
    %v174 = vunpack.c.l.b16 %v151
    %v175 = vunpack.c.l.b16 %v152
    %v176 = vunpack.c.l.b16 %v153
    %v177 = vunpack.c.l.b16 %v154
    %v178 = vunpack.c.l.b16 %v155
    %v179 = vpack.c.b16 %v172, %v171
    %v180 = vpack.c.b16 %v174, %v173
    %v181 = vpack.c.b16 %v176, %v175
    %v182 = vpack.c.b16 %v178, %v177
    %vm187 = vcmask 523264
    %v189 = vsel %vm187, %v147, 0
    %191 = vmatprep.subr.bf16.mxu0 0
    %192 = vmatpush1.bf16.msra.mxu0 %v179
    %193 = vmatprep.subr.bf16.mxu0 0
    %194 = vmatpush1.bf16.msra.mxu0 %v180
    %195 = vmatprep.subr.bf16.mxu0 0
    %196 = vmatpush1.bf16.msra.mxu0 %v181
    %197 = vmatprep.subr.bf16.mxu0 0
    %198 = vmatpush1.bf16.msra.mxu0 %v182
    %199 = vmatprep.subr.bf16.mxu0 0
    %200 = vmatpush1.bf16.msra.mxu0 0
    %201 = vmatprep.subr.bf16.mxu0 0
    %202 = vmatpush1.bf16.msra.mxu0 0
    %203 = vmatprep.subr.bf16.mxu0 0
    %204 = vmatpush1.bf16.msra.mxu0 0
    %205 = vmatprep.subr.bf16.mxu0 0
    %206 = vmatpush1.bf16.msra.mxu0 0
    %207 = vmatprep.subr.bf16.mxu0 0
    %208 = vmatpush1.bf16.msra.mxu0 0
    %209 = vmatprep.subr.bf16.mxu0 0
    %210 = vmatpush1.bf16.msra.mxu0 0
    %211 = vmatprep.subr.bf16.mxu0 0
    %212 = vmatpush1.bf16.msra.mxu0 0
    %213 = vmatprep.subr.bf16.mxu0 0
    %214 = vmatpush1.bf16.msra.mxu0 0
    %215 = vmatprep.subr.bf16.mxu0 0
    %216 = vmatpush1.bf16.msra.mxu0 0
    %217 = vmatprep.subr.bf16.mxu0 0
    %218 = vmatpush1.bf16.msra.mxu0 0
    %219 = vmatprep.subr.bf16.mxu0 0
    %220 = vmatpush1.bf16.msra.mxu0 0
    %221 = vmatprep.subr.bf16.mxu0 0
    %222 = vmatpush1.bf16.msra.mxu0 0
    %223 = vmatprep.mubr.bf16.mxu0 0
    %224 = vmatmul.mubr.bf16.gmra.mrb[0].mxu0 %v189
    %v225 = vpop.f32.mrb[0].mxu0
    %v226 = vadd.f32 %v161, %v225
    %v227 = vpop.f32.mrb[0].mxu0
    %v228 = vpop.f32.mrb[0].mxu0
    %v229 = vpop.f32.mrb[0].mxu0
    %230 = vdwg.mxu0
    %v231 = vmax.f32 %v226, 0.0
    %v232 = vpack.c.bf16 %v231, %v231
    %v233 = vld [vmem:[%s5] sm:$0xf]
    %v234 = vld [vmem:[%s5 + $0x4] sm:$0xf]
    %v235 = vld [vmem:[%s5 + $0x8] sm:$0xf]
    %v236 = vld [vmem:[%s5 + $0xc] sm:$0xf]
    %v237 = vld [vmem:[%s5 + $0x10] sm:$0xf]
    %v238 = vld [vmem:[%s5 + $0x14] sm:$0xf]
    %v239 = vld [vmem:[%s5 + $0x18] sm:$0xf]
    %v240 = vld [vmem:[%s5 + $0x1c] sm:$0xf]
    %v241 = vld [vmem:[%s5 + $0x20] sm:$0xf]
    %v242 = vld [vmem:[%s5 + $0x24] sm:$0xf]
    %v243 = vld [vmem:[%s5 + $0x28] sm:$0xf]
    %v244 = vld [vmem:[%s5 + $0x2c] sm:$0xf]
    %v245 = vld [vmem:[%s5 + $0x30] sm:$0xf]
    %v246 = vld [vmem:[%s5 + $0x34] sm:$0xf]
    %v247 = vld [vmem:[%s5 + $0x38] sm:$0xf]
    %v248 = vld [vmem:[%s5 + $0x3c] sm:$0xf]
    %v249 = vld [vmem:[%s6] sm:$0x1]
    %v251 = vlaneseq
    %v252 = vshrl.u32 %v251, 7
    %v253 = vsub.s32 0, %v252
    %v254 = vrot.slane %v249, %v253
    %v272 = vunpack.c.l.b16 %v233
    %v273 = vunpack.c.l.b16 %v234
    %v274 = vunpack.c.l.b16 %v235
    %v275 = vunpack.c.l.b16 %v236
    %v276 = vunpack.c.l.b16 %v237
    %v277 = vunpack.c.l.b16 %v238
    %v278 = vunpack.c.l.b16 %v239
    %v279 = vunpack.c.l.b16 %v240
    %v280 = vunpack.c.l.b16 %v241
    %v281 = vunpack.c.l.b16 %v242
    %v282 = vunpack.c.l.b16 %v243
    %v283 = vunpack.c.l.b16 %v244
    %v284 = vunpack.c.l.b16 %v245
    %v285 = vunpack.c.l.b16 %v246
    %v286 = vunpack.c.l.b16 %v247
    %v287 = vunpack.c.l.b16 %v248
    %v288 = vpack.c.b16 %v273, %v272
    %v289 = vpack.c.b16 %v275, %v274
    %v290 = vpack.c.b16 %v277, %v276
    %v291 = vpack.c.b16 %v279, %v278
    %v292 = vpack.c.b16 %v281, %v280
    %v293 = vpack.c.b16 %v283, %v282
    %v294 = vpack.c.b16 %v285, %v284
    %v295 = vpack.c.b16 %v287, %v286
    %304 = vmatprep.subr.bf16.mxu0 0
    %305 = vmatpush1.bf16.msra.mxu0 %v288
    %306 = vmatprep.subr.bf16.mxu0 0
    %307 = vmatpush1.bf16.msra.mxu0 %v289
    %308 = vmatprep.subr.bf16.mxu0 0
    %309 = vmatpush1.bf16.msra.mxu0 %v290
    %310 = vmatprep.subr.bf16.mxu0 0
    %311 = vmatpush1.bf16.msra.mxu0 %v291
    %312 = vmatprep.subr.bf16.mxu0 0
    %313 = vmatpush1.bf16.msra.mxu0 %v292
    %314 = vmatprep.subr.bf16.mxu0 0
    %315 = vmatpush1.bf16.msra.mxu0 %v293
    %316 = vmatprep.subr.bf16.mxu0 0
    %317 = vmatpush1.bf16.msra.mxu0 %v294
    %318 = vmatprep.subr.bf16.mxu0 0
    %319 = vmatpush1.bf16.msra.mxu0 %v295
    %320 = vmatprep.subr.bf16.mxu0 0
    %321 = vmatpush1.bf16.msra.mxu0 0
    %322 = vmatprep.subr.bf16.mxu0 0
    %323 = vmatpush1.bf16.msra.mxu0 0
    %324 = vmatprep.subr.bf16.mxu0 0
    %325 = vmatpush1.bf16.msra.mxu0 0
    %326 = vmatprep.subr.bf16.mxu0 0
    %327 = vmatpush1.bf16.msra.mxu0 0
    %328 = vmatprep.subr.bf16.mxu0 0
    %329 = vmatpush1.bf16.msra.mxu0 0
    %330 = vmatprep.subr.bf16.mxu0 0
    %331 = vmatpush1.bf16.msra.mxu0 0
    %332 = vmatprep.subr.bf16.mxu0 0
    %333 = vmatpush1.bf16.msra.mxu0 0
    %334 = vmatprep.subr.bf16.mxu0 0
    %335 = vmatpush1.bf16.msra.mxu0 0
    %336 = vmatprep.mubr.bf16.mxu0 0
    %337 = vmatmul.mubr.bf16.gmra.mrb[0].mxu0 %v232
    %v338 = vpop.f32.mrb[0].mxu0
    %v339 = vadd.f32 %v254, %v338
    %v340 = vpop.f32.mrb[0].mxu0
    %v341 = vpop.f32.mrb[0].mxu0
    %v342 = vpop.f32.mrb[0].mxu0
    %343 = vdwg.mxu0
    %v344 = vmax.f32 %v339, 0.0
    %v345 = vpack.c.bf16 %v344, %v344
    %v346 = vld [vmem:[%s7] sm:$0xf]
    %v347 = vld [vmem:[%s7 + $0x4] sm:$0xf]
    %v348 = vld [vmem:[%s7 + $0x8] sm:$0xf]
    %v349 = vld [vmem:[%s7 + $0xc] sm:$0xf]
    %v350 = vld [vmem:[%s7 + $0x10] sm:$0xf]
    %v351 = vld [vmem:[%s7 + $0x14] sm:$0xf]
    %v352 = vld [vmem:[%s7 + $0x18] sm:$0xf]
    %v353 = vld [vmem:[%s7 + $0x1c] sm:$0xf]
    %v354 = vld [vmem:[%s7 + $0x20] sm:$0xf]
    %v355 = vld [vmem:[%s7 + $0x24] sm:$0xf]
    %v356 = vld [vmem:[%s7 + $0x28] sm:$0xf]
    %v357 = vld [vmem:[%s7 + $0x2c] sm:$0xf]
    %v358 = vld [vmem:[%s7 + $0x30] sm:$0xf]
    %v359 = vld [vmem:[%s7 + $0x34] sm:$0xf]
    %v360 = vld [vmem:[%s7 + $0x38] sm:$0xf]
    %v361 = vld [vmem:[%s7 + $0x3c] sm:$0xf]
    %v362 = vld [vmem:[%s8] sm:$0x1]
    %v364 = vlaneseq
    %v365 = vshrl.u32 %v364, 7
    %v366 = vsub.s32 0, %v365
    %v367 = vrot.slane %v362, %v366
    %v385 = vunpack.c.l.b16 %v346
    %v386 = vunpack.c.l.b16 %v347
    %v387 = vunpack.c.l.b16 %v348
    %v388 = vunpack.c.l.b16 %v349
    %v389 = vunpack.c.l.b16 %v350
    %v390 = vunpack.c.l.b16 %v351
    %v391 = vunpack.c.l.b16 %v352
    %v392 = vunpack.c.l.b16 %v353
    %v393 = vunpack.c.l.b16 %v354
    %v394 = vunpack.c.l.b16 %v355
    %v395 = vunpack.c.l.b16 %v356
    %v396 = vunpack.c.l.b16 %v357
    %v397 = vunpack.c.l.b16 %v358
    %v398 = vunpack.c.l.b16 %v359
    %v399 = vunpack.c.l.b16 %v360
    %v400 = vunpack.c.l.b16 %v361
    %v401 = vpack.c.b16 %v386, %v385
    %v402 = vpack.c.b16 %v388, %v387
    %v403 = vpack.c.b16 %v390, %v389
    %v404 = vpack.c.b16 %v392, %v391
    %v405 = vpack.c.b16 %v394, %v393
    %v406 = vpack.c.b16 %v396, %v395
    %v407 = vpack.c.b16 %v398, %v397
    %v408 = vpack.c.b16 %v400, %v399
    %417 = vmatprep.subr.bf16.mxu0 0
    %418 = vmatpush1.bf16.msra.mxu0 %v401
    %419 = vmatprep.subr.bf16.mxu0 0
    %420 = vmatpush1.bf16.msra.mxu0 %v402
    %421 = vmatprep.subr.bf16.mxu0 0
    %422 = vmatpush1.bf16.msra.mxu0 %v403
    %423 = vmatprep.subr.bf16.mxu0 0
    %424 = vmatpush1.bf16.msra.mxu0 %v404
    %425 = vmatprep.subr.bf16.mxu0 0
    %426 = vmatpush1.bf16.msra.mxu0 %v405
    %427 = vmatprep.subr.bf16.mxu0 0
    %428 = vmatpush1.bf16.msra.mxu0 %v406
    %429 = vmatprep.subr.bf16.mxu0 0
    %430 = vmatpush1.bf16.msra.mxu0 %v407
    %431 = vmatprep.subr.bf16.mxu0 0
    %432 = vmatpush1.bf16.msra.mxu0 %v408
    %433 = vmatprep.subr.bf16.mxu0 0
    %434 = vmatpush1.bf16.msra.mxu0 0
    %435 = vmatprep.subr.bf16.mxu0 0
    %436 = vmatpush1.bf16.msra.mxu0 0
    %437 = vmatprep.subr.bf16.mxu0 0
    %438 = vmatpush1.bf16.msra.mxu0 0
    %439 = vmatprep.subr.bf16.mxu0 0
    %440 = vmatpush1.bf16.msra.mxu0 0
    %441 = vmatprep.subr.bf16.mxu0 0
    %442 = vmatpush1.bf16.msra.mxu0 0
    %443 = vmatprep.subr.bf16.mxu0 0
    %444 = vmatpush1.bf16.msra.mxu0 0
    %445 = vmatprep.subr.bf16.mxu0 0
    %446 = vmatpush1.bf16.msra.mxu0 0
    %447 = vmatprep.subr.bf16.mxu0 0
    %448 = vmatpush1.bf16.msra.mxu0 0
    %449 = vmatprep.mubr.bf16.mxu0 0
    %450 = vmatmul.mubr.bf16.gmra.mrb[0].mxu0 %v345
    %v451 = vpop.f32.mrb[0].mxu0
    %v452 = vadd.f32 %v367, %v451
    %v453 = vpop.f32.mrb[0].mxu0
    %v454 = vpop.f32.mrb[0].mxu0
    %v455 = vpop.f32.mrb[0].mxu0
    %456 = vdwg.mxu0
    %v457 = vmax.f32 %v452, 0.0
    %v458 = vxor.u32 %v457, 2147483648
    %v459 = vmul.f32 %v458, 1.442695
    %v460 = vpow.pop %v459
    %v461 = vadd.f32 %v460, 1.0
    %v462 = vrcp.pop %v461
    %v463 = vmul.f32 1.0, %v462
    %464 = vst [vmem:[#allocation2] sm:$0xff] %v463
    // Predicated region
    $region38: #{hiddennet_forward.1} parent=1 // pred_check
      _
    $region39: #{hiddennet_forward.1} parent=1 // pred_check_branch
      %466 = sbr.rel (0) target = $region41
    $region40: #{hiddennet_forward.1} parent=1 // pred_region
      %s468 = ssub.s32 128, 128
      %469 = vsyncadd [#allocation3], %s468
      %s471 = sshll.u32 [#allocation2], 4
      %s472 = int_to_ptr.vmem [resolvable:$true] %s471
      %474 = dma.vmem_to_hbm [thread:$0]  %s472, 128, %s9, [#allocation3]
    $region41: #{hiddennet_forward.1} parent=1 // pred_fallthru
      _
    // Predicated region
    $region42: #{hiddennet_forward.1} parent=1 // pred_check
      _
    $region43: #{hiddennet_forward.1} parent=1 // pred_check_branch
      %476 = sbr.rel (0) target = $region45
    $region44: #{hiddennet_forward.1} parent=1 // pred_region
      %477 = dma.done [#allocation3], 128
    $region45: #{hiddennet_forward.1} parent=1 // pred_fallthru
      _
    %478 = vsyncpa [#allocation3], 1

</llo_original>
